<compile_context>
chip_gen: v7x
topology: tpu7x:2x2x1
jax: 0.10.0
libtpu: 0.0.40
codegen_flags: <defaults>
</compile_context>

<pallas_src>
import jax
import jax.numpy as jnp
import numpy as np
from jax.experimental import pallas as pl
from jax.experimental.pallas import tpu as pltpu


def _div_loss_kernel(p_ref, out_ref, acc_ref):
    """p_ref: (B_TILE, 2, H, W) VMEM block; acc_ref: (H, W) f32 VMEM scratch;
    out_ref: (1, 1) f32 SMEM output (sum of div**2 over the whole batch)."""
    step = pl.program_id(0)
    nsteps = pl.num_programs(0)

    p = p_ref[...].astype(jnp.float32)      # (B, 2, H, W)
    u = p[:, 0]                             # (B, H, W)
    v = p[:, 1]                             # (B, H, W)
    B, H, W = u.shape

    # Hoisted boundary masks: one iota per axis, reused for both compares.
    col = jax.lax.broadcasted_iota(jnp.int32, (B, H, W), 2)
    row = jax.lax.broadcasted_iota(jnp.int32, (B, H, W), 1)

    # ---- u_x: gradient along W (lane axis).  2 rolls; boundaries from narrow slices.
    up1 = jnp.roll(u, -1, 2)                # u[..., j+1] (wrap at j=W-1, overwritten)
    um1 = jnp.roll(u, 1, 2)                 # u[..., j-1] (wrap at j=0,   overwritten)
    ux_c = (up1 - um1) * 0.5
    ux_first = -1.5 * u[:, :, 0:1] + 2.0 * u[:, :, 1:2] - 0.5 * u[:, :, 2:3]
    ux_last = (0.5 * u[:, :, W - 3:W - 2] - 2.0 * u[:, :, W - 2:W - 1]
               + 1.5 * u[:, :, W - 1:W])
    u_x = jnp.where(col == 0, ux_first, jnp.where(col == W - 1, ux_last, ux_c))

    # ---- v_y: gradient along H (sublane axis).
    vp1 = jnp.roll(v, -1, 1)
    vm1 = jnp.roll(v, 1, 1)
    vy_c = (vp1 - vm1) * 0.5
    vy_first = -1.5 * v[:, 0:1, :] + 2.0 * v[:, 1:2, :] - 0.5 * v[:, 2:3, :]
    vy_last = (0.5 * v[:, H - 3:H - 2, :] - 2.0 * v[:, H - 2:H - 1, :]
               + 1.5 * v[:, H - 1:H, :])
    v_y = jnp.where(row == 0, vy_first, jnp.where(row == H - 1, vy_last, vy_c))

    div = u_x + v_y
    # Per-step partial: reduce only over the (leading) batch axis -> cheap VPU adds.
    partial = jnp.sum(div * div, axis=0)    # (H, W)

    @pl.when(step == 0)
    def _():
        acc_ref[...] = jnp.zeros_like(acc_ref)

    acc_ref[...] += partial

    # Single full reduce + scalar store only in the epilogue.
    @pl.when(step == nsteps - 1)
    def _():
        out_ref[0, 0] = jnp.sum(acc_ref[...])


def divergence_loss(preds, b_tile=None):
    """preds: (bs, 2, H, W).  Returns scalar MSE(div, 0) as float32."""
    bs, c, H, W = preds.shape
    assert c == 2, "preds must have 2 channels (u, v)"
    assert H >= 3 and W >= 3, "field_grad stencil needs H >= 3 and W >= 3"

    itemsize = jnp.dtype(preds.dtype).itemsize
    bytes_per_batch = 2 * H * W * itemsize

    if b_tile is None:
        # Largest divisor of bs whose (B_TILE, 2, H, W) block stays under a
        # conservative per-buffer budget (x2 for double-buffering).  6 MiB per
        # buffer keeps us well inside scoped VMEM on v5e/v6e and physical VMEM
        # on v7x (64 MiB).
        budget = 6 * 1024 * 1024
        b_tile = 1
        for d in range(1, bs + 1):
            if bs % d == 0 and d * bytes_per_batch <= budget:
                b_tile = d
    assert bs % b_tile == 0
    steps = bs // b_tile

    sum_sq = pl.pallas_call(
        _div_loss_kernel,
        out_shape=jax.ShapeDtypeStruct((1, 1), jnp.float32),
        grid_spec=pltpu.PrefetchScalarGridSpec(
            num_scalar_prefetch=0,
            grid=(steps,),
            in_specs=[
                pl.BlockSpec((b_tile, 2, H, W), lambda b: (b, 0, 0, 0)),
            ],
            out_specs=pl.BlockSpec(memory_space=pltpu.SMEM),
            scratch_shapes=[pltpu.VMEM((H, W), jnp.float32)],
        ),
        compiler_params=pltpu.CompilerParams(
            dimension_semantics=("arbitrary",),   # accumulator across grid steps
            vmem_limit_bytes=32 * 1024 * 1024,    # safe on v5e/v6e/v7x
        ),
    )(preds)

    # MSE mean over all div elements: bs * 1 * H * W
    return sum_sq[0, 0] / jnp.float32(bs * H * W)


# ---------- pure-JAX reference (mirrors the PyTorch field_grad exactly) ----------
def _ref_field_grad(f, dim):
    dim += 1
    ax = f.ndim - dim
    n = f.shape[ax]
    sl = lambda s, e: jax.lax.slice_in_dim(f, s, e, axis=ax)
    interior = (sl(2, n) - sl(0, n - 2)) / 2.0
    first = -1.5 * sl(0, 1) + 2.0 * sl(1, 2) - 0.5 * sl(2, 3)
    last = 0.5 * sl(n - 3, n - 2) - 2.0 * sl(n - 2, n - 1) + 1.5 * sl(n - 1, n)
    return jnp.concatenate([first, interior, last], axis=ax)


def _ref_divergence_loss(preds):
    u = preds[:, :1]
    v = preds[:, -1:]
    u_x = _ref_field_grad(u, 0)
    v_y = _ref_field_grad(v, 1)
    div = v_y + u_x
    return jnp.mean(div * div)


if __name__ == "__main__":
    key = jax.random.PRNGKey(0)
    bs, H, W = 2, 16, 16
    preds = jax.random.normal(key, (bs, 2, H, W), dtype=jnp.float32)

    ref = jax.block_until_ready(_ref_divergence_loss(preds))

    # Single-step path (whole batch in one grid step).
    loss = jax.block_until_ready(divergence_loss(preds))
    np.testing.assert_allclose(np.asarray(loss), np.asarray(ref), rtol=1e-5, atol=1e-6)

    # Multi-step path (exercises the VMEM accumulator across grid steps).
    loss_tiled = jax.block_until_ready(divergence_loss(preds, b_tile=1))
    np.testing.assert_allclose(np.asarray(loss_tiled), np.asarray(ref), rtol=1e-5, atol=1e-6)

    print("KERNEL_OK")
</pallas_src>

<mosaic_0001>
module attributes {stable_mosaic.version = 11 : i64} {
  func.func @_div_loss_kernel(%arg0: i32, %arg1: memref<2x2x16x16xf32, #tpu.memory_space<vmem>>, %arg2: memref<1x1xf32, #tpu.memory_space<smem>>, %arg3: memref<16x16xf32, #tpu.memory_space<vmem>>) attributes {dimension_semantics = [#tpu.dimension_semantics<arbitrary>], iteration_bounds = array<i64: 1>, scalar_prefetch = 0 : i64, scratch_operands = 1 : i64, tpu.core_type = #tpu.core_type<tc>, window_params = [{transform_indices = @transform_0, window_bounds = array<i64: 2, 2, 16, 16>}, {transform_indices = @transform_1, window_bounds = array<i64: 1, 1>}]} {
    %c0 = arith.constant 0 : index
    %c0_0 = arith.constant 0 : index
    %c0_1 = arith.constant 0 : index
    %c0_2 = arith.constant 0 : index
    %0 = vector.load %arg1[%c0, %c0_0, %c0_1, %c0_2] : memref<2x2x16x16xf32, #tpu.memory_space<vmem>>, vector<2x2x16x16xf32>
    %1 = vector.extract_strided_slice %0 {offsets = [0, 0, 0, 0], sizes = [2, 1, 16, 16], strides = [1, 1, 1, 1]} : vector<2x2x16x16xf32> to vector<2x1x16x16xf32>
    %2 = vector.shape_cast %1 : vector<2x1x16x16xf32> to vector<2x16x16xf32>
    %3 = vector.extract_strided_slice %0 {offsets = [0, 1, 0, 0], sizes = [2, 1, 16, 16], strides = [1, 1, 1, 1]} : vector<2x2x16x16xf32> to vector<2x1x16x16xf32>
    %4 = vector.shape_cast %3 : vector<2x1x16x16xf32> to vector<2x16x16xf32>
    %5 = tpu.iota {dimensions = array<i32: 2>} : vector<2x16x16xi32>
    %6 = tpu.iota {dimensions = array<i32: 1>} : vector<2x16x16xi32>
    %7 = vector.extract_strided_slice %2 {offsets = [0, 0, 1], sizes = [2, 16, 15], strides = [1, 1, 1]} : vector<2x16x16xf32> to vector<2x16x15xf32>
    %8 = vector.extract_strided_slice %2 {offsets = [0, 0, 0], sizes = [2, 16, 1], strides = [1, 1, 1]} : vector<2x16x16xf32> to vector<2x16x1xf32>
    %9 = tpu.concatenate %7, %8 in 2 : vector<2x16x15xf32>, vector<2x16x1xf32> -> vector<2x16x16xf32>
    %10 = vector.extract_strided_slice %2 {offsets = [0, 0, 15], sizes = [2, 16, 1], strides = [1, 1, 1]} : vector<2x16x16xf32> to vector<2x16x1xf32>
    %11 = vector.extract_strided_slice %2 {offsets = [0, 0, 0], sizes = [2, 16, 15], strides = [1, 1, 1]} : vector<2x16x16xf32> to vector<2x16x15xf32>
    %12 = tpu.concatenate %10, %11 in 2 : vector<2x16x1xf32>, vector<2x16x15xf32> -> vector<2x16x16xf32>
    %13 = arith.subf %9, %12 : vector<2x16x16xf32>
    %cst = arith.constant 5.000000e-01 : f32
    %14 = vector.broadcast %cst : f32 to vector<2x16x16xf32>
    %15 = arith.mulf %13, %14 : vector<2x16x16xf32>
    %16 = vector.extract_strided_slice %2 {offsets = [0, 0, 0], sizes = [2, 16, 1], strides = [1, 1, 1]} : vector<2x16x16xf32> to vector<2x16x1xf32>
    %cst_3 = arith.constant -1.500000e+00 : f32
    %17 = vector.broadcast %cst_3 : f32 to vector<2x16x1xf32>
    %18 = arith.mulf %17, %16 : vector<2x16x1xf32>
    %19 = vector.extract_strided_slice %2 {offsets = [0, 0, 1], sizes = [2, 16, 1], strides = [1, 1, 1]} : vector<2x16x16xf32> to vector<2x16x1xf32>
    %cst_4 = arith.constant 2.000000e+00 : f32
    %20 = vector.broadcast %cst_4 : f32 to vector<2x16x1xf32>
    %21 = arith.mulf %20, %19 : vector<2x16x1xf32>
    %22 = arith.addf %18, %21 : vector<2x16x1xf32>
    %23 = vector.extract_strided_slice %2 {offsets = [0, 0, 2], sizes = [2, 16, 1], strides = [1, 1, 1]} : vector<2x16x16xf32> to vector<2x16x1xf32>
    %cst_5 = arith.constant 5.000000e-01 : f32
    %24 = vector.broadcast %cst_5 : f32 to vector<2x16x1xf32>
    %25 = arith.mulf %24, %23 : vector<2x16x1xf32>
    %26 = arith.subf %22, %25 : vector<2x16x1xf32>
    %27 = vector.extract_strided_slice %2 {offsets = [0, 0, 13], sizes = [2, 16, 1], strides = [1, 1, 1]} : vector<2x16x16xf32> to vector<2x16x1xf32>
    %cst_6 = arith.constant 5.000000e-01 : f32
    %28 = vector.broadcast %cst_6 : f32 to vector<2x16x1xf32>
    %29 = arith.mulf %28, %27 : vector<2x16x1xf32>
    %30 = vector.extract_strided_slice %2 {offsets = [0, 0, 14], sizes = [2, 16, 1], strides = [1, 1, 1]} : vector<2x16x16xf32> to vector<2x16x1xf32>
    %cst_7 = arith.constant 2.000000e+00 : f32
    %31 = vector.broadcast %cst_7 : f32 to vector<2x16x1xf32>
    %32 = arith.mulf %31, %30 : vector<2x16x1xf32>
    %33 = arith.subf %29, %32 : vector<2x16x1xf32>
    %34 = vector.extract_strided_slice %2 {offsets = [0, 0, 15], sizes = [2, 16, 1], strides = [1, 1, 1]} : vector<2x16x16xf32> to vector<2x16x1xf32>
    %cst_8 = arith.constant 1.500000e+00 : f32
    %35 = vector.broadcast %cst_8 : f32 to vector<2x16x1xf32>
    %36 = arith.mulf %35, %34 : vector<2x16x1xf32>
    %37 = arith.addf %33, %36 : vector<2x16x1xf32>
    %c0_i32 = arith.constant 0 : i32
    %38 = vector.broadcast %c0_i32 : i32 to vector<2x16x16xi32>
    %39 = arith.cmpi eq, %5, %38 : vector<2x16x16xi32>
    %c15_i32 = arith.constant 15 : i32
    %40 = vector.broadcast %c15_i32 : i32 to vector<2x16x16xi32>
    %41 = arith.cmpi eq, %5, %40 : vector<2x16x16xi32>
    %42 = vector.shape_cast %37 : vector<2x16x1xf32> to vector<2x16x1xf32>
    %43 = vector.broadcast %42 : vector<2x16x1xf32> to vector<2x16x16xf32>
    %44 = arith.select %41, %43, %15 : vector<2x16x16xi1>, vector<2x16x16xf32>
    %45 = vector.shape_cast %26 : vector<2x16x1xf32> to vector<2x16x1xf32>
    %46 = vector.broadcast %45 : vector<2x16x1xf32> to vector<2x16x16xf32>
    %47 = arith.select %39, %46, %44 : vector<2x16x16xi1>, vector<2x16x16xf32>
    %48 = vector.extract_strided_slice %4 {offsets = [0, 1, 0], sizes = [2, 15, 16], strides = [1, 1, 1]} : vector<2x16x16xf32> to vector<2x15x16xf32>
    %49 = vector.extract_strided_slice %4 {offsets = [0, 0, 0], sizes = [2, 1, 16], strides = [1, 1, 1]} : vector<2x16x16xf32> to vector<2x1x16xf32>
    %50 = tpu.concatenate %48, %49 in 1 : vector<2x15x16xf32>, vector<2x1x16xf32> -> vector<2x16x16xf32>
    %51 = vector.extract_strided_slice %4 {offsets = [0, 15, 0], sizes = [2, 1, 16], strides = [1, 1, 1]} : vector<2x16x16xf32> to vector<2x1x16xf32>
    %52 = vector.extract_strided_slice %4 {offsets = [0, 0, 0], sizes = [2, 15, 16], strides = [1, 1, 1]} : vector<2x16x16xf32> to vector<2x15x16xf32>
    %53 = tpu.concatenate %51, %52 in 1 : vector<2x1x16xf32>, vector<2x15x16xf32> -> vector<2x16x16xf32>
    %54 = arith.subf %50, %53 : vector<2x16x16xf32>
    %cst_9 = arith.constant 5.000000e-01 : f32
    %55 = vector.broadcast %cst_9 : f32 to vector<2x16x16xf32>
    %56 = arith.mulf %54, %55 : vector<2x16x16xf32>
    %57 = vector.extract_strided_slice %4 {offsets = [0, 0, 0], sizes = [2, 1, 16], strides = [1, 1, 1]} : vector<2x16x16xf32> to vector<2x1x16xf32>
    %cst_10 = arith.constant -1.500000e+00 : f32
    %58 = vector.broadcast %cst_10 : f32 to vector<2x1x16xf32>
    %59 = arith.mulf %58, %57 : vector<2x1x16xf32>
    %60 = vector.extract_strided_slice %4 {offsets = [0, 1, 0], sizes = [2, 1, 16], strides = [1, 1, 1]} : vector<2x16x16xf32> to vector<2x1x16xf32>
    %cst_11 = arith.constant 2.000000e+00 : f32
    %61 = vector.broadcast %cst_11 : f32 to vector<2x1x16xf32>
    %62 = arith.mulf %61, %60 : vector<2x1x16xf32>
    %63 = arith.addf %59, %62 : vector<2x1x16xf32>
    %64 = vector.extract_strided_slice %4 {offsets = [0, 2, 0], sizes = [2, 1, 16], strides = [1, 1, 1]} : vector<2x16x16xf32> to vector<2x1x16xf32>
    %cst_12 = arith.constant 5.000000e-01 : f32
    %65 = vector.broadcast %cst_12 : f32 to vector<2x1x16xf32>
    %66 = arith.mulf %65, %64 : vector<2x1x16xf32>
    %67 = arith.subf %63, %66 : vector<2x1x16xf32>
    %68 = vector.extract_strided_slice %4 {offsets = [0, 13, 0], sizes = [2, 1, 16], strides = [1, 1, 1]} : vector<2x16x16xf32> to vector<2x1x16xf32>
    %cst_13 = arith.constant 5.000000e-01 : f32
    %69 = vector.broadcast %cst_13 : f32 to vector<2x1x16xf32>
    %70 = arith.mulf %69, %68 : vector<2x1x16xf32>
    %71 = vector.extract_strided_slice %4 {offsets = [0, 14, 0], sizes = [2, 1, 16], strides = [1, 1, 1]} : vector<2x16x16xf32> to vector<2x1x16xf32>
    %cst_14 = arith.constant 2.000000e+00 : f32
    %72 = vector.broadcast %cst_14 : f32 to vector<2x1x16xf32>
    %73 = arith.mulf %72, %71 : vector<2x1x16xf32>
    %74 = arith.subf %70, %73 : vector<2x1x16xf32>
    %75 = vector.extract_strided_slice %4 {offsets = [0, 15, 0], sizes = [2, 1, 16], strides = [1, 1, 1]} : vector<2x16x16xf32> to vector<2x1x16xf32>
    %cst_15 = arith.constant 1.500000e+00 : f32
    %76 = vector.broadcast %cst_15 : f32 to vector<2x1x16xf32>
    %77 = arith.mulf %76, %75 : vector<2x1x16xf32>
    %78 = arith.addf %74, %77 : vector<2x1x16xf32>
    %c0_i32_16 = arith.constant 0 : i32
    %79 = vector.broadcast %c0_i32_16 : i32 to vector<2x16x16xi32>
    %80 = arith.cmpi eq, %6, %79 : vector<2x16x16xi32>
    %c15_i32_17 = arith.constant 15 : i32
    %81 = vector.broadcast %c15_i32_17 : i32 to vector<2x16x16xi32>
    %82 = arith.cmpi eq, %6, %81 : vector<2x16x16xi32>
    %83 = vector.shape_cast %78 : vector<2x1x16xf32> to vector<2x1x16xf32>
    %84 = vector.broadcast %83 : vector<2x1x16xf32> to vector<2x16x16xf32>
    %85 = arith.select %82, %84, %56 : vector<2x16x16xi1>, vector<2x16x16xf32>
    %86 = vector.shape_cast %67 : vector<2x1x16xf32> to vector<2x1x16xf32>
    %87 = vector.broadcast %86 : vector<2x1x16xf32> to vector<2x16x16xf32>
    %88 = arith.select %80, %87, %85 : vector<2x16x16xi1>, vector<2x16x16xf32>
    %89 = arith.addf %47, %88 : vector<2x16x16xf32>
    %90 = arith.mulf %89, %89 : vector<2x16x16xf32>
    %cst_18 = arith.constant dense<0.000000e+00> : vector<16x16xf32>
    %91 = vector.multi_reduction <add>, %90, %cst_18 [0] : vector<2x16x16xf32> to vector<16x16xf32>
    %c0_i32_19 = arith.constant 0 : i32
    %92 = arith.cmpi eq, %arg0, %c0_i32_19 : i32
    %93 = arith.extui %92 : i1 to i32
    %c0_i32_20 = arith.constant 0 : i32
    %94 = arith.cmpi ne, %93, %c0_i32_20 : i32
    scf.if %94 {
      %cst_27 = arith.constant 0.000000e+00 : f32
      %101 = vector.broadcast %cst_27 : f32 to vector<16x16xf32>
      %c0_28 = arith.constant 0 : index
      %c0_29 = arith.constant 0 : index
      %102 = vector.load %arg3[%c0_28, %c0_29] : memref<16x16xf32, #tpu.memory_space<vmem>>, vector<16x16xf32>
      tpu.vector_store %arg3[%c0_28, %c0_29], %101 {strides = array<i32>} : memref<16x16xf32, #tpu.memory_space<vmem>>, vector<16x16xf32>,
    } else {
    }
    %c0_21 = arith.constant 0 : index
    %c0_22 = arith.constant 0 : index
    %95 = vector.load %arg3[%c0_21, %c0_22] : memref<16x16xf32, #tpu.memory_space<vmem>>, vector<16x16xf32>
    %96 = arith.addf %95, %91 : vector<16x16xf32>
    %c0_23 = arith.constant 0 : index
    %c0_24 = arith.constant 0 : index
    %97 = vector.load %arg3[%c0_23, %c0_24] : memref<16x16xf32, #tpu.memory_space<vmem>>, vector<16x16xf32>
    tpu.vector_store %arg3[%c0_23, %c0_24], %96 {strides = array<i32>} : memref<16x16xf32, #tpu.memory_space<vmem>>, vector<16x16xf32>,
    %c0_i32_25 = arith.constant 0 : i32
    %98 = arith.cmpi eq, %arg0, %c0_i32_25 : i32
    %99 = arith.extui %98 : i1 to i32
    %c0_i32_26 = arith.constant 0 : i32
    %100 = arith.cmpi ne, %99, %c0_i32_26 : i32
    scf.if %100 {
      %c0_27 = arith.constant 0 : index
      %c0_28 = arith.constant 0 : index
      %101 = vector.load %arg3[%c0_27, %c0_28] : memref<16x16xf32, #tpu.memory_space<vmem>>, vector<16x16xf32>
      %102 = vector.shape_cast %101 : vector<16x16xf32> to vector<1x16x16xf32>
      %cst_29 = arith.constant dense<0.000000e+00> : vector<1xf32>
      %103 = vector.multi_reduction <add>, %102, %cst_29 [1, 2] : vector<1x16x16xf32> to vector<1xf32>
      %104 = vector.shape_cast %103 : vector<1xf32> to vector<1x1x1xf32>
      %105 = vector.extract %104[0, 0, 0] : f32 from vector<1x1x1xf32>
      %c0_30 = arith.constant 0 : index
      %c0_31 = arith.constant 0 : index
      %106 = memref.load %arg2[%c0_30, %c0_31] : memref<1x1xf32, #tpu.memory_space<smem>>
      memref.store %105, %arg2[%c0_30, %c0_31] : memref<1x1xf32, #tpu.memory_space<smem>>
    } else {
    }
    return
  }
  func.func @transform_0(%arg0: i32) -> (i32, i32, i32, i32) {
    %c0_i32 = arith.constant 0 : i32
    %c0_i32_0 = arith.constant 0 : i32
    %c0_i32_1 = arith.constant 0 : i32
    %c0_i32_2 = arith.constant 0 : i32
    return %arg0, %c0_i32, %c0_i32_0, %c0_i32_1 : i32, i32, i32, i32
  }
  func.func @transform_1(%arg0: i32) -> (i32, i32) {
    %c0_i32 = arith.constant 0 : i32
    %c0_i32_0 = arith.constant 0 : i32
    %c0_i32_1 = arith.constant 0 : i32
    return %c0_i32, %c0_i32_0 : i32, i32
  }
}

</mosaic_0001>

<llo_original>
// kernel: tpu_custom_call.1
$region0: #{tpu_custom_call.1}
  #allocation0 [shape = 'u32[]', space=smem, size = 0x4, offset = 0x4, fixed_abs, tag = 'smem constant byte address 0x4 - core index']
  #allocation1 [shape = 'u32[144,128]{1,0:T(1,128)}', space=vmem, size = 0x12000, scoped, tag = 'internal scratch']
  #allocation2 [shape = 'f32[16,16]{1,0:T(8,128)}', space=vmem, size = 0x2000, scoped, tag = 'scratch operand']
  %s0 = inlined_call_operand.hbm [shape: f32[2,2,16,16], index: 0, kind: input, shape index: {}]
  %s1 = inlined_call_operand.hbm [shape: f32[1,1], index: 1, kind: output, shape index: {}]
  %s2 = sld [smem:[#allocation0]]
  $region26: #{tpu_custom_call.1} parent=0
    _
  %s4 = ssub.s32 1, %s2
  %s5 = scalar_select 0, %s4, %s2
  $region1: #{tpu_custom_call.1} parent=0
    #allocation3 [shape = 'u8[32768]{0}', space=vmem, size = 0x8000, scoped, tag = 'input window, operand 0, single buffered']
    #allocation4 [shape = 's32[1]{0}', space=sflag, size = 0x4, scoped, tag = 'scoped memory for tpu_custom_call.1']
    #allocation5 [shape = 's32[1]{0}', space=sflag, size = 0x4, scoped, tag = 'scoped memory for tpu_custom_call.1']
    #allocation6 [shape = 'u8[512]{0}', space=smem, size = 0x200, scoped, tag = 'output window, operand 0, single buffered']
    %6 = vsyncpa [#allocation4], 0
    %7 = vsyncpa [#allocation5], 0
    // Predicated region
    $region2: #{tpu_custom_call.1} parent=1 // pred_check
      _
    $region3: #{tpu_custom_call.1} parent=1 // pred_check_branch
      %9 = sbr.rel (0) target = $region5
    $region4: #{tpu_custom_call.1} parent=1 // pred_region
      %s11 = ssub.s32 1024, 1024
      %12 = vsyncadd [#allocation4], %s11
      %s13 = sshll.u32 [#allocation3], 4
      %s14 = int_to_ptr.vmem [resolvable:$true] %s13
      %19 = dma.hbm_to_vmem [thread:$0]  %s0, 1024, %s14, [#allocation4], 128, 128, 8
    $region5: #{tpu_custom_call.1} parent=1 // pred_fallthru
      _
    // Predicated region
    $region6: #{tpu_custom_call.1} parent=1 // pred_check
      _
    $region7: #{tpu_custom_call.1} parent=1 // pred_check_branch
      %21 = sbr.rel (0) target = $region9
    $region8: #{tpu_custom_call.1} parent=1 // pred_region
      %22 = dma.done [#allocation4], 1024
    $region9: #{tpu_custom_call.1} parent=1 // pred_fallthru
      _
    %v23 = vld [vmem:[#allocation3] sm:$0xff]
    %v24 = vld [vmem:[#allocation3 + $0x8] sm:$0xff]
    %v25 = vld [vmem:[#allocation3 + $0x10] sm:$0xff]
    %v26 = vld [vmem:[#allocation3 + $0x18] sm:$0xff]
    %v27 = vld [vmem:[#allocation3 + $0x20] sm:$0xff]
    %v28 = vld [vmem:[#allocation3 + $0x28] sm:$0xff]
    %v29 = vld [vmem:[#allocation3 + $0x30] sm:$0xff]
    %v30 = vld [vmem:[#allocation3 + $0x38] sm:$0xff]
    %v31 = vlaneseq
    %v32 = vand.u32 %v31, 127
    %v33 = vlaneseq
    %v34 = vshrl.u32 %v33, 7
    %v35 = vadd.s32 %v34, 8
    %40 = vrot.lane.b32.xlu0 %v23, 127
    %v41 = vpop.permute.xlu0 %40
    %42 = vrot.lane.b32.xlu0 %v24, 127
    %v43 = vpop.permute.xlu0 %42
    %44 = vrot.lane.b32.xlu0 %v27, 127
    %v45 = vpop.permute.xlu0 %44
    %46 = vrot.lane.b32.xlu0 %v28, 127
    %v47 = vpop.permute.xlu0 %46
    %52 = vrot.lane.b32.xlu0 %v23, 15
    %v53 = vpop.permute.xlu0 %52
    %54 = vrot.lane.b32.xlu0 %v24, 15
    %v55 = vpop.permute.xlu0 %54
    %56 = vrot.lane.b32.xlu0 %v27, 15
    %v57 = vpop.permute.xlu0 %56
    %58 = vrot.lane.b32.xlu0 %v28, 15
    %v59 = vpop.permute.xlu0 %58
    %vm64 = vcmask 121856
    %v65 = vsel %vm64, %v41, %v53
    %v66 = vsel %vm64, %v43, %v55
    %v67 = vsel %vm64, %v45, %v57
    %v68 = vsel %vm64, %v47, %v59
    %69 = vrot.lane.b32.xlu0 %v23, 113
    %v70 = vpop.permute.xlu0 %69
    %71 = vrot.lane.b32.xlu0 %v24, 113
    %v72 = vpop.permute.xlu0 %71
    %73 = vrot.lane.b32.xlu0 %v27, 113
    %v74 = vpop.permute.xlu0 %73
    %75 = vrot.lane.b32.xlu0 %v28, 113
    %v76 = vpop.permute.xlu0 %75
    %81 = vrot.lane.b32.xlu0 %v23, 1
    %v82 = vpop.permute.xlu0 %81
    %83 = vrot.lane.b32.xlu0 %v24, 1
    %v84 = vpop.permute.xlu0 %83
    %85 = vrot.lane.b32.xlu0 %v27, 1
    %v86 = vpop.permute.xlu0 %85
    %87 = vrot.lane.b32.xlu0 %v28, 1
    %v88 = vpop.permute.xlu0 %87
    %vm93 = vcmask 7168
    %v94 = vsel %vm93, %v70, %v82
    %v95 = vsel %vm93, %v72, %v84
    %v96 = vsel %vm93, %v74, %v86
    %v97 = vsel %vm93, %v76, %v88
    %v98 = vsub.f32 %v65, %v94
    %v99 = vsub.f32 %v66, %v95
    %v100 = vsub.f32 %v67, %v96
    %v101 = vsub.f32 %v68, %v97
    %v102 = vmul.f32 %v98, 0.5
    %v103 = vmul.f32 %v99, 0.5
    %v104 = vmul.f32 %v100, 0.5
    %v105 = vmul.f32 %v101, 0.5
    %v106 = vmul.f32 %v23, -1.5
    %v107 = vmul.f32 %v24, -1.5
    %v108 = vmul.f32 %v27, -1.5
    %v109 = vmul.f32 %v28, -1.5
    %v110 = vmul.f32 %v23, 2.0
    %v111 = vmul.f32 %v24, 2.0
    %v112 = vmul.f32 %v27, 2.0
    %v113 = vmul.f32 %v28, 2.0
    %118 = vrot.lane.b32.xlu0 %v110, 127
    %v119 = vpop.permute.xlu0 %118
    %120 = vrot.lane.b32.xlu0 %v111, 127
    %v121 = vpop.permute.xlu0 %120
    %122 = vrot.lane.b32.xlu0 %v112, 127
    %v123 = vpop.permute.xlu0 %122
    %124 = vrot.lane.b32.xlu0 %v113, 127
    %v125 = vpop.permute.xlu0 %124
    %v130 = vadd.f32 %v106, %v119
    %v131 = vadd.f32 %v107, %v121
    %v132 = vadd.f32 %v108, %v123
    %v133 = vadd.f32 %v109, %v125
    %v134 = vmul.f32 %v23, 0.5
    %v135 = vmul.f32 %v24, 0.5
    %v136 = vmul.f32 %v27, 0.5
    %v137 = vmul.f32 %v28, 0.5
    %142 = vrot.lane.b32.xlu0 %v134, 126
    %v143 = vpop.permute.xlu0 %142
    %144 = vrot.lane.b32.xlu0 %v135, 126
    %v145 = vpop.permute.xlu0 %144
    %146 = vrot.lane.b32.xlu0 %v136, 126
    %v147 = vpop.permute.xlu0 %146
    %148 = vrot.lane.b32.xlu0 %v137, 126
    %v149 = vpop.permute.xlu0 %148
    %v154 = vsub.f32 %v130, %v143
    %v155 = vsub.f32 %v131, %v145
    %v156 = vsub.f32 %v132, %v147
    %v157 = vsub.f32 %v133, %v149
    %v158 = vsub.f32 %v134, %v119
    %v159 = vsub.f32 %v135, %v121
    %v160 = vsub.f32 %v136, %v123
    %v161 = vsub.f32 %v137, %v125
    %v162 = vmul.f32 %v23, 1.5
    %v163 = vmul.f32 %v24, 1.5
    %v164 = vmul.f32 %v27, 1.5
    %v165 = vmul.f32 %v28, 1.5
    %170 = vrot.lane.b32.xlu0 %v162, 126
    %v171 = vpop.permute.xlu0 %170
    %172 = vrot.lane.b32.xlu0 %v163, 126
    %v173 = vpop.permute.xlu0 %172
    %174 = vrot.lane.b32.xlu0 %v164, 126
    %v175 = vpop.permute.xlu0 %174
    %176 = vrot.lane.b32.xlu0 %v165, 126
    %v177 = vpop.permute.xlu0 %176
    %v182 = vadd.f32 %v158, %v171
    %v183 = vadd.f32 %v159, %v173
    %v184 = vadd.f32 %v160, %v175
    %v185 = vadd.f32 %v161, %v177
    %vm186 = vcmp.eq.s32.totalorder %v32, 0
    %vm187 = vcmp.eq.s32.totalorder %v32, 15
    %189 = vset.pattern.permute.xlu0 13
    %190 = vperm.xlu0 %189, %v182
    %v191 = vpop.permute.xlu0 %190
    %194 = vset.pattern.permute.xlu0 13
    %195 = vperm.xlu0 %194, %v183
    %v196 = vpop.permute.xlu0 %195
    %199 = vset.pattern.permute.xlu0 13
    %200 = vperm.xlu0 %199, %v184
    %v201 = vpop.permute.xlu0 %200
    %204 = vset.pattern.permute.xlu0 13
    %205 = vperm.xlu0 %204, %v185
    %v206 = vpop.permute.xlu0 %205
    %v208 = vsel %vm187, %v191, %v102
    %v209 = vsel %vm187, %v196, %v103
    %v210 = vsel %vm187, %v201, %v104
    %v211 = vsel %vm187, %v206, %v105
    %213 = vset.pattern.permute.xlu0 0
    %214 = vperm.xlu0 %213, %v154
    %v215 = vpop.permute.xlu0 %214
    %218 = vset.pattern.permute.xlu0 0
    %219 = vperm.xlu0 %218, %v155
    %v220 = vpop.permute.xlu0 %219
    %223 = vset.pattern.permute.xlu0 0
    %224 = vperm.xlu0 %223, %v156
    %v225 = vpop.permute.xlu0 %224
    %228 = vset.pattern.permute.xlu0 0
    %229 = vperm.xlu0 %228, %v157
    %v230 = vpop.permute.xlu0 %229
    %v232 = vsel %vm186, %v215, %v208
    %v233 = vsel %vm186, %v220, %v209
    %v234 = vsel %vm186, %v225, %v210
    %v235 = vsel %vm186, %v230, %v211
    %vm240 = vcmask 1046528
    %v241 = vrot.slane %v25, 1
    %v242 = vrot.slane %v26, 1
    %v243 = vsel %vm240, %v241, %v242
    %v244 = vrot.slane %v29, 1
    %v245 = vrot.slane %v30, 1
    %v246 = vsel %vm240, %v244, %v245
    %v253 = vsel %vm240, %v242, %v241
    %v254 = vsel %vm240, %v245, %v244
    %v255 = vrot.slane %v26, 7
    %v256 = vrot.slane %v30, 7
    %vm259 = vcmask 1040384
    %v260 = vrot.slane %v25, 7
    %v261 = vsel %vm259, %v260, %v255
    %v262 = vrot.slane %v29, 7
    %v263 = vsel %vm259, %v262, %v256
    %v268 = vsel %vm259, %v255, %v260
    %v269 = vsel %vm259, %v256, %v262
    %v270 = vsub.f32 %v243, %v268
    %v271 = vsub.f32 %v253, %v261
    %v272 = vsub.f32 %v246, %v269
    %v273 = vsub.f32 %v254, %v263
    %v274 = vmul.f32 %v270, 0.5
    %v275 = vmul.f32 %v271, 0.5
    %v276 = vmul.f32 %v272, 0.5
    %v277 = vmul.f32 %v273, 0.5
    %v278 = vmul.f32 %v25, -1.5
    %v279 = vmul.f32 %v29, -1.5
    %v280 = vmul.f32 %v25, 2.0
    %v281 = vmul.f32 %v29, 2.0
    %v284 = vrot.slane %v280, 1
    %v285 = vrot.slane %v281, 1
    %v288 = vadd.f32 %v278, %v284
    %v289 = vadd.f32 %v279, %v285
    %v290 = vmul.f32 %v25, 0.5
    %v291 = vmul.f32 %v29, 0.5
    %v294 = vrot.slane %v290, 2
    %v295 = vrot.slane %v291, 2
    %v298 = vsub.f32 %v288, %v294
    %v299 = vsub.f32 %v289, %v295
    %v300 = vmul.f32 %v26, 0.5
    %v301 = vmul.f32 %v30, 0.5
    %v302 = vmul.f32 %v26, 2.0
    %v303 = vmul.f32 %v30, 2.0
    %v306 = vrot.slane %v302, 1
    %v307 = vrot.slane %v303, 1
    %v310 = vsub.f32 %v300, %v306
    %v311 = vsub.f32 %v301, %v307
    %v312 = vmul.f32 %v26, 1.5
    %v313 = vmul.f32 %v30, 1.5
    %v316 = vrot.slane %v312, 2
    %v317 = vrot.slane %v313, 2
    %v320 = vadd.f32 %v310, %v316
    %v321 = vadd.f32 %v311, %v317
    %vm322 = vcmp.eq.s32.totalorder %v34, 0
    %vm323 = vcmp.eq.s32.totalorder %v35, 0
    %vm324 = vcmp.eq.s32.totalorder %v34, 15
    %vm325 = vcmp.eq.s32.totalorder %v35, 15
    %v326 = vlaneseq
    %v327 = vshrl.u32 %v326, 7
    %v328 = vsub.s32 5, %v327
    %v329 = vrot.slane %v320, %v328
    %v330 = vlaneseq
    %v331 = vshrl.u32 %v330, 7
    %v332 = vsub.s32 5, %v331
    %v333 = vrot.slane %v321, %v332
    %v334 = vsel %vm324, %v329, %v274
    %v335 = vsel %vm325, %v329, %v275
    %v336 = vsel %vm324, %v333, %v276
    %v337 = vsel %vm325, %v333, %v277
    %v338 = vlaneseq
    %v339 = vshrl.u32 %v338, 7
    %v340 = vsub.s32 0, %v339
    %v341 = vrot.slane %v298, %v340
    %v342 = vlaneseq
    %v343 = vshrl.u32 %v342, 7
    %v344 = vsub.s32 0, %v343
    %v345 = vrot.slane %v299, %v344
    %v346 = vsel %vm322, %v341, %v334
    %v347 = vsel %vm323, %v341, %v335
    %v348 = vsel %vm322, %v345, %v336
    %v349 = vsel %vm323, %v345, %v337
    %v350 = vadd.f32 %v232, %v346
    %v351 = vadd.f32 %v233, %v347
    %v352 = vadd.f32 %v234, %v348
    %v353 = vadd.f32 %v235, %v349
    %v354 = vmul.f32 %v350, %v350
    %v355 = vmul.f32 %v351, %v351
    %v356 = vmul.f32 %v352, %v352
    %v357 = vmul.f32 %v353, %v353
    %vm358 = vcmask 130048
    %v359 = vsel %vm358, %v354, 0.0
    %v360 = vsel %vm358, %v356, 0.0
    %v361 = vadd.f32 %v359, %v360
    %v362 = vsel %vm358, %v355, 0.0
    %v363 = vsel %vm358, %v357, 0.0
    %v364 = vadd.f32 %v362, %v363
    %p365 = scmp.eq.s32.totalorder 0, 0
    // Predicated region
    $region10: #{tpu_custom_call.1} parent=1 // pred_check
      %p366 = pneg %p365
    $region11: #{tpu_custom_call.1} parent=1 // pred_check_branch
      %368 = sbr.rel (%p366) target = $region13
    $region12: #{tpu_custom_call.1} parent=1 // pred_region
      %369 = vst.msk [vmem:[#allocation2] sm:$0xff] %vm358, 0.0
      %370 = vst.msk [vmem:[#allocation2 + $0x8] sm:$0xff] %vm358, 0.0
    $region13: #{tpu_custom_call.1} parent=1 // pred_fallthru
      _
    %v371 = vld [vmem:[#allocation2] sm:$0xff]
    %v372 = vld [vmem:[#allocation2 + $0x8] sm:$0xff]
    %v373 = vadd.f32 %v371, %v361
    %v374 = vadd.f32 %v372, %v364
    %375 = vst.msk [vmem:[#allocation2] sm:$0xff] %vm358, %v373
    %376 = vst.msk [vmem:[#allocation2 + $0x8] sm:$0xff] %vm358, %v374
    // Predicated region
    $region14: #{tpu_custom_call.1} parent=1 // pred_check
      %p377 = pneg %p365
    $region15: #{tpu_custom_call.1} parent=1 // pred_check_branch
      %379 = sbr.rel (%p377) target = $region17
    $region16: #{tpu_custom_call.1} parent=1 // pred_region
      %v380 = vld [vmem:[#allocation2] sm:$0xff]
      %v381 = vld [vmem:[#allocation2 + $0x8] sm:$0xff]
      %v382 = vsel %vm358, %v380, 0.0
      %v383 = vsel %vm358, %v381, 0.0
      %v384 = vadd.f32 %v382, %v383
      %385 = vadd.xlane.f32.xlu0 %v384
      %v386 = vpop.xlane.xlu0 %385
      %v387 = vrot.slane %v386, 4
      %v388 = vadd.f32 %v386, %v387
      %v389 = vrot.slane %v388, 2
      %v390 = vadd.f32 %v388, %v389
      %v391 = vrot.slane %v390, 1
      %v392 = vadd.f32 %v390, %v391
      %s393 = vtos %v392
      %s394 = scalar_lea.smem [#allocation6], 0
      %395 = sst [smem:[%s394]] %s393
    $region17: #{tpu_custom_call.1} parent=1 // pred_fallthru
      _
    // Predicated region
    $region18: #{tpu_custom_call.1} parent=1 // pred_check
      _
    $region19: #{tpu_custom_call.1} parent=1 // pred_check_branch
      %397 = sbr.rel (0) target = $region21
    $region20: #{tpu_custom_call.1} parent=1 // pred_region
      %s399 = ssub.s32 16, 16
      %400 = vsyncadd [#allocation5], %s399
      %403 = dma.smem_to_hbm [#allocation6], 16, %s1, [#allocation5]
    $region21: #{tpu_custom_call.1} parent=1 // pred_fallthru
      _
    // Predicated region
    $region22: #{tpu_custom_call.1} parent=1 // pred_check
      _
    $region23: #{tpu_custom_call.1} parent=1 // pred_check_branch
      %405 = sbr.rel (0) target = $region25
    $region24: #{tpu_custom_call.1} parent=1 // pred_region
      %406 = dma.done [#allocation5], 16
    $region25: #{tpu_custom_call.1} parent=1 // pred_fallthru
      _
    %407 = sfence
    %408 = vsyncpa [#allocation4], 1
    %409 = vsyncpa [#allocation5], 1

</llo_original>
